<compile_context>
chip_gen: v7x
topology: tpu7x:2x2x1
jax: 0.10.0
libtpu: 0.0.40
codegen_flags: <defaults>
</compile_context>

<pallas_src>
import functools

import jax
import jax.numpy as jnp
from jax.experimental import pallas as pl
from jax.experimental.pallas import tpu as pltpu

MARGIN = 1.0
LANES = 128
SUBLANES = 8
ROW_TILE = 8192              # rows per grid step (f32: 4 MiB per input block)
SMALL_INPUT_ELEMS = 1 << 18  # below this, plain jnp beats the pallas_call launch


def _hinge_sum_kernel(x_ref, t_ref, out_ref, *, steps, total_blocks,
                      last_block_valid_rows, needs_mask, has_phantom):
    """Accumulate sum(relu(margin - x*t)) into a per-core resident (8,128) block."""
    c = pl.program_id(0)          # core shard (outer, "parallel")
    s = pl.program_id(1)          # row-block step (inner, "arbitrary")

    @pl.when(s == 0)
    def _():
        out_ref[...] = jnp.zeros_like(out_ref)

    x = x_ref[...].astype(jnp.float32)        # upcast in-kernel (bf16/int8 safe)
    t = t_ref[...].astype(jnp.float32)
    hinge = jnp.maximum(MARGIN - x * t, 0.0)  # VPU elementwise

    gb = c * steps + s                        # global row-block index
    last = total_blocks - 1

    def accum(h):
        # Fold the (rows,128) tile onto the resident (8,128) accumulator with
        # pure VPU adds; the single final reduce happens in the wrapper.
        out_ref[...] += h.reshape(-1, SUBLANES, LANES).sum(axis=0)

    if needs_mask:
        # Only the globally-last block overhangs the array. Gate it with
        # pl.when and use a *static* row slice (valid row count is a static
        # multiple of 8) so no iota/select runs on the hot path.
        @pl.when(gb < last)
        def _():
            accum(hinge)

        @pl.when(gb == last)
        def _():
            accum(hinge[:last_block_valid_rows])
    elif has_phantom:
        # Odd block count split over 2 cores: core 1's final step is a
        # re-fetched (clamped) block that must not be accumulated twice.
        @pl.when(gb < total_blocks)
        def _():
            accum(hinge)
    else:
        accum(hinge)


def hinge_loss(x: jax.Array, t: jax.Array, *, row_tile: int = ROW_TILE,
               min_pallas_elems: int = SMALL_INPUT_ELEMS) -> jax.Array:
    assert x.shape == t.shape, "input and target must have the same shape"
    n = x.size
    inv_n = 1.0 / float(n)

    xf = x.reshape(-1)
    tf = t.reshape(-1)

    def _jnp_hinge_sum(a, b):
        a = a.astype(jnp.float32)
        b = b.astype(jnp.float32)
        return jnp.sum(jnp.maximum(MARGIN - a * b, 0.0))

    # Small-input fast path: launch/pipeline setup dominates for tiny n.
    if n < min_pallas_elems:
        return _jnp_hinge_sum(xf, tf) * inv_n

    # Sublane-tiling multiple for the narrowest dtype (f32->8, bf16->16, int8->32).
    def _sub_mult(dt):
        return max(SUBLANES, 32 // jnp.dtype(dt).itemsize)

    mult = max(_sub_mult(x.dtype), _sub_mult(t.dtype))

    rows = n // LANES
    bulk_rows = (rows // mult) * mult
    n_bulk = bulk_rows * LANES

    # Tiny tail (< mult*LANES + LANES elements): plain jnp, negligible cost.
    tail_sum = (_jnp_hinge_sum(xf[n_bulk:], tf[n_bulk:])
                if n_bulk < n else jnp.float32(0.0))

    if bulk_rows == 0:
        return tail_sum * inv_n

    x2 = xf[:n_bulk].reshape(bulk_rows, LANES)
    t2 = tf[:n_bulk].reshape(bulk_rows, LANES)

    block_rows = max(mult, (min(row_tile, bulk_rows) // mult) * mult)
    total_blocks = pl.cdiv(bulk_rows, block_rows)
    needs_mask = (total_blocks * block_rows) != bulk_rows

    # Always shard row blocks across 2 TensorCores when there is more than one
    # block (v7x megacore); on v5e/v6e the outer axis just becomes a loop.
    ncores = 2 if total_blocks >= 2 else 1
    steps = pl.cdiv(total_blocks, ncores)
    has_phantom = (ncores * steps) != total_blocks
    last_block = total_blocks - 1
    last_block_valid_rows = bulk_rows - last_block * block_rows  # static, multiple of 8

    kernel = functools.partial(
        _hinge_sum_kernel,
        steps=steps, total_blocks=total_blocks,
        last_block_valid_rows=last_block_valid_rows,
        needs_mask=needs_mask, has_phantom=has_phantom)

    def in_map(c, s, steps=steps, last=last_block):
        # Clamp the phantom block (odd block count, core 1) to a valid index;
        # its contribution is skipped inside the kernel via pl.when.
        return (jnp.minimum(c * steps + s, last), 0)

    itemsize = x.dtype.itemsize + t.dtype.itemsize
    inflight = 2 * block_rows * LANES * itemsize        # 2 pipeline buffers / input
    # Generous but v7x-safe (64 MiB per-TC physical); also lifts v5e's 16 MiB default.
    vmem_limit = int(min(48 << 20, max(24 << 20, inflight + (24 << 20))))

    partials = pl.pallas_call(
        kernel,
        out_shape=jax.ShapeDtypeStruct((ncores * SUBLANES, LANES), jnp.float32),
        grid_spec=pltpu.PrefetchScalarGridSpec(
            num_scalar_prefetch=0,
            grid=(ncores, steps),
            in_specs=[
                pl.BlockSpec((block_rows, LANES), in_map),
                pl.BlockSpec((block_rows, LANES), in_map),
            ],
            out_specs=pl.BlockSpec((SUBLANES, LANES), lambda c, s: (c, 0)),
        ),
        compiler_params=pltpu.CompilerParams(
            dimension_semantics=("parallel", "arbitrary"),
            vmem_limit_bytes=vmem_limit,
        ),
        cost_estimate=pl.CostEstimate(
            flops=4 * n_bulk,
            transcendentals=0,
            bytes_accessed=n_bulk * itemsize + ncores * SUBLANES * LANES * 4),
    )(x2, t2)

    return (jnp.sum(partials) + tail_sum) * inv_n


def hinge_loss_ref(x, t):
    x = x.astype(jnp.float32)
    t = t.astype(jnp.float32)
    return jnp.mean(jnp.maximum(MARGIN - x * t, 0.0))


if __name__ == "__main__":
    key = jax.random.PRNGKey(0)
    k1, k2, k3, k4 = jax.random.split(key, 4)

    # Small classifier-style shapes: scores + {-1,+1} targets.
    x = jax.random.normal(k1, (2, 4, 16, 16), dtype=jnp.float32)
    t = jnp.sign(jax.random.normal(k2, (2, 4, 16, 16), dtype=jnp.float32))
    t = jnp.where(t == 0, 1.0, t)  # avoid zeros in the sign target

    # Force the Pallas path (the demo input is below the small-input threshold).
    loss = hinge_loss(x, t, min_pallas_elems=0)
    jax.block_until_ready(loss)
    ref = hinge_loss_ref(x, t)
    assert jnp.allclose(loss, ref, rtol=1e-5, atol=1e-5), (loss, ref)

    # Default (small-input fast) path must agree too.
    loss_fast = hinge_loss(x, t)
    jax.block_until_ready(loss_fast)
    assert jnp.allclose(loss_fast, ref, rtol=1e-5, atol=1e-5), (loss_fast, ref)

    # Exercise multi-block / 2-core-split / masked-last-block / jnp-tail paths
    # with a small row_tile so shapes stay tiny (72 full rows -> 3 blocks of 32).
    x2 = jax.random.normal(k3, (9316,), dtype=jnp.float32)
    t2 = jnp.where(jax.random.normal(k4, (9316,)) >= 0, 1.0, -1.0).astype(jnp.float32)
    loss2 = hinge_loss(x2, t2, row_tile=32, min_pallas_elems=0)
    jax.block_until_ready(loss2)
    ref2 = hinge_loss_ref(x2, t2)
    assert jnp.allclose(loss2, ref2, rtol=1e-5, atol=1e-5), (loss2, ref2)

    print("KERNEL_OK")
</pallas_src>

<mosaic_0001>
module attributes {stable_mosaic.version = 11 : i64} {
  func.func @_hinge_sum_kernel(%arg0: i32, %arg1: i32, %arg2: memref<16x128xf32, #tpu.memory_space<vmem>>, %arg3: memref<16x128xf32, #tpu.memory_space<vmem>>, %arg4: memref<8x128xf32, #tpu.memory_space<vmem>>) attributes {dimension_semantics = [#tpu.dimension_semantics<parallel>, #tpu.dimension_semantics<arbitrary>], iteration_bounds = array<i64: 1, 1>, scalar_prefetch = 0 : i64, scratch_operands = 0 : i64, tpu.core_type = #tpu.core_type<tc>, window_params = [{transform_indices = @transform_0, window_bounds = array<i64: 16, 128>}, {transform_indices = @transform_1, window_bounds = array<i64: 16, 128>}, {transform_indices = @transform_2, window_bounds = array<i64: 8, 128>}]} {
    %c0_i32 = arith.constant 0 : i32
    %0 = arith.cmpi eq, %arg1, %c0_i32 : i32
    %1 = arith.extui %0 : i1 to i32
    %c0_i32_0 = arith.constant 0 : i32
    %2 = arith.cmpi ne, %1, %c0_i32_0 : i32
    scf.if %2 {
      %cst_10 = arith.constant 0.000000e+00 : f32
      %15 = vector.broadcast %cst_10 : f32 to vector<8x128xf32>
      %c0_11 = arith.constant 0 : index
      %c0_12 = arith.constant 0 : index
      %16 = vector.load %arg4[%c0_11, %c0_12] : memref<8x128xf32, #tpu.memory_space<vmem>>, vector<8x128xf32>
      tpu.vector_store %arg4[%c0_11, %c0_12], %15 {strides = array<i32>} : memref<8x128xf32, #tpu.memory_space<vmem>>, vector<8x128xf32>,
    } else {
    }
    %c0 = arith.constant 0 : index
    %c0_1 = arith.constant 0 : index
    %3 = vector.load %arg2[%c0, %c0_1] : memref<16x128xf32, #tpu.memory_space<vmem>>, vector<16x128xf32>
    %c0_2 = arith.constant 0 : index
    %c0_3 = arith.constant 0 : index
    %4 = vector.load %arg3[%c0_2, %c0_3] : memref<16x128xf32, #tpu.memory_space<vmem>>, vector<16x128xf32>
    %5 = arith.mulf %3, %4 : vector<16x128xf32>
    %cst = arith.constant 1.000000e+00 : f32
    %6 = vector.broadcast %cst : f32 to vector<16x128xf32>
    %7 = arith.subf %6, %5 : vector<16x128xf32>
    %cst_4 = arith.constant 0.000000e+00 : f32
    %8 = vector.broadcast %cst_4 : f32 to vector<16x128xf32>
    %9 = arith.maximumf %7, %8 : vector<16x128xf32>
    %c0_5 = arith.constant 0 : index
    %c0_6 = arith.constant 0 : index
    %10 = vector.load %arg4[%c0_5, %c0_6] : memref<8x128xf32, #tpu.memory_space<vmem>>, vector<8x128xf32>
    %11 = vector.shape_cast %9 : vector<16x128xf32> to vector<2x8x128xf32>
    %cst_7 = arith.constant dense<0.000000e+00> : vector<8x128xf32>
    %12 = vector.multi_reduction <add>, %11, %cst_7 [0] : vector<2x8x128xf32> to vector<8x128xf32>
    %13 = arith.addf %10, %12 : vector<8x128xf32>
    %c0_8 = arith.constant 0 : index
    %c0_9 = arith.constant 0 : index
    %14 = vector.load %arg4[%c0_8, %c0_9] : memref<8x128xf32, #tpu.memory_space<vmem>>, vector<8x128xf32>
    tpu.vector_store %arg4[%c0_8, %c0_9], %13 {strides = array<i32>} : memref<8x128xf32, #tpu.memory_space<vmem>>, vector<8x128xf32>,
    return
  }
  func.func @transform_0(%arg0: i32, %arg1: i32) -> (i32, i32) {
    %c1_i32 = arith.constant 1 : i32
    %0 = arith.muli %arg0, %c1_i32 : i32
    %1 = arith.addi %0, %arg1 : i32
    %c0_i32 = arith.constant 0 : i32
    %2 = arith.minsi %1, %c0_i32 : i32
    %c0_i32_0 = arith.constant 0 : i32
    %c0_i32_1 = arith.constant 0 : i32
    return %2, %c0_i32_0 : i32, i32
  }
  func.func @transform_1(%arg0: i32, %arg1: i32) -> (i32, i32) {
    %c1_i32 = arith.constant 1 : i32
    %0 = arith.muli %arg0, %c1_i32 : i32
    %1 = arith.addi %0, %arg1 : i32
    %c0_i32 = arith.constant 0 : i32
    %2 = arith.minsi %1, %c0_i32 : i32
    %c0_i32_0 = arith.constant 0 : i32
    %c0_i32_1 = arith.constant 0 : i32
    return %2, %c0_i32_0 : i32, i32
  }
  func.func @transform_2(%arg0: i32, %arg1: i32) -> (i32, i32) {
    %c0_i32 = arith.constant 0 : i32
    %c0_i32_0 = arith.constant 0 : i32
    return %arg0, %c0_i32 : i32, i32
  }
}

</mosaic_0001>

<llo_original>
// kernel: tpu_custom_call.1
$region0: #{tpu_custom_call.1}
  #allocation0 [shape = 'u32[]', space=smem, size = 0x4, offset = 0x4, fixed_abs, tag = 'smem constant byte address 0x4 - core index']
  #allocation1 [shape = 'u32[144,128]{1,0:T(1,128)}', space=vmem, size = 0x12000, scoped, tag = 'internal scratch']
  %s0 = inlined_call_operand.hbm [shape: f32[16,128], index: 0, kind: input, shape index: {}]
  %s1 = inlined_call_operand.hbm [shape: f32[16,128], index: 1, kind: input, shape index: {}]
  %s2 = inlined_call_operand.hbm [shape: f32[8,128], index: 2, kind: output, shape index: {}]
  %s3 = sld [smem:[#allocation0]]
  $region30: #{tpu_custom_call.1} parent=0
    _
  %s5 = ssub.s32 1, %s3
  %s6 = scalar_select 0, %s5, %s3
  $region1: #{tpu_custom_call.1} parent=0
    #allocation2 [shape = 'u8[8192]{0}', space=vmem, size = 0x2000, scoped, tag = 'input window, operand 0, single buffered']
    #allocation3 [shape = 's32[1]{0}', space=sflag, size = 0x4, scoped, tag = 'scoped memory for tpu_custom_call.1']
    #allocation4 [shape = 's32[1]{0}', space=sflag, size = 0x4, scoped, tag = 'scoped memory for tpu_custom_call.1']
    #allocation5 [shape = 'u8[8192]{0}', space=vmem, size = 0x2000, scoped, tag = 'input window, operand 1, single buffered']
    #allocation6 [shape = 's32[1]{0}', space=sflag, size = 0x4, scoped, tag = 'scoped memory for tpu_custom_call.1']
    #allocation7 [shape = 'u8[4096]{0}', space=vmem, size = 0x1000, scoped, tag = 'output window, operand 0, single buffered']
    %7 = vsyncpa [#allocation3], 0
    %8 = vsyncpa [#allocation6], 0
    %9 = vsyncpa [#allocation4], 0
    // Predicated region
    $region2: #{tpu_custom_call.1} parent=1 // pred_check
      _
    $region3: #{tpu_custom_call.1} parent=1 // pred_check_branch
      %11 = sbr.rel (0) target = $region5
    $region4: #{tpu_custom_call.1} parent=1 // pred_region
      %s12 = sadd.s32 0, 0
      %p13 = scmp.lt.s32.totalorder %s12, 0
      %s14 = scalar_select %p13, %s12, 0
      %s15 = smul.u32 2, %s14
      %s17 = ssub.s32 256, 256
      %18 = vsyncadd [#allocation3], %s17
      %s19 = smul.addr %s15, 128
      %s20 = scalar_lea.hbm %s0, %s19
      %s21 = sshll.u32 [#allocation2], 4
      %s22 = int_to_ptr.vmem [resolvable:$true] %s21
      %27 = dma.hbm_to_vmem [thread:$0]  %s20, 256, %s22, [#allocation3], 128, 128, 8
    $region5: #{tpu_custom_call.1} parent=1 // pred_fallthru
      _
    // Predicated region
    $region6: #{tpu_custom_call.1} parent=1 // pred_check
      _
    $region7: #{tpu_custom_call.1} parent=1 // pred_check_branch
      %29 = sbr.rel (0) target = $region9
    $region8: #{tpu_custom_call.1} parent=1 // pred_region
      %s30 = sadd.s32 0, 0
      %p31 = scmp.lt.s32.totalorder %s30, 0
      %s32 = scalar_select %p31, %s30, 0
      %s33 = smul.u32 2, %s32
      %s35 = ssub.s32 256, 256
      %36 = vsyncadd [#allocation6], %s35
      %s37 = smul.addr %s33, 128
      %s38 = scalar_lea.hbm %s1, %s37
      %s39 = sshll.u32 [#allocation5], 4
      %s40 = int_to_ptr.vmem [resolvable:$true] %s39
      %45 = dma.hbm_to_vmem [thread:$0]  %s38, 256, %s40, [#allocation6], 128, 128, 8
    $region9: #{tpu_custom_call.1} parent=1 // pred_fallthru
      _
    // Predicated region
    $region10: #{tpu_custom_call.1} parent=1 // pred_check
      _
    $region11: #{tpu_custom_call.1} parent=1 // pred_check_branch
      %47 = sbr.rel (0) target = $region13
    $region12: #{tpu_custom_call.1} parent=1 // pred_region
      %48 = dma.done [#allocation3], 256
    $region13: #{tpu_custom_call.1} parent=1 // pred_fallthru
      _
    // Predicated region
    $region14: #{tpu_custom_call.1} parent=1 // pred_check
      _
    $region15: #{tpu_custom_call.1} parent=1 // pred_check_branch
      %50 = sbr.rel (0) target = $region17
    $region16: #{tpu_custom_call.1} parent=1 // pred_region
      %51 = dma.done [#allocation6], 256
    $region17: #{tpu_custom_call.1} parent=1 // pred_fallthru
      _
    %s52 = sadd.s32 0, 0
    %p53 = scmp.lt.s32.totalorder %s52, 0
    %s54 = scalar_select %p53, %s52, 0
    %s55 = smul.u32 2, %s54
    %s56 = sadd.s32 0, 0
    %p57 = scmp.lt.s32.totalorder %s56, 0
    %s58 = scalar_select %p57, %s56, 0
    %s59 = smul.u32 2, %s58
    %p60 = scmp.eq.s32.totalorder 0, 0
    // Predicated region
    $region18: #{tpu_custom_call.1} parent=1 // pred_check
      %p61 = pneg %p60
    $region19: #{tpu_custom_call.1} parent=1 // pred_check_branch
      %63 = sbr.rel (%p61) target = $region21
    $region20: #{tpu_custom_call.1} parent=1 // pred_region
      %64 = vst [vmem:[#allocation7] sm:$0xff] 0.0
    $region21: #{tpu_custom_call.1} parent=1 // pred_fallthru
      _
    %v65 = vld [vmem:[#allocation2] sm:$0xff]
    %v66 = vld [vmem:[#allocation2 + $0x8] sm:$0xff]
    %v67 = vld [vmem:[#allocation5] sm:$0xff]
    %v68 = vld [vmem:[#allocation5 + $0x8] sm:$0xff]
    %v69 = vmul.f32 %v65, %v67
    %v70 = vmul.f32 %v66, %v68
    %v71 = vsub.f32 1.0, %v69
    %v72 = vsub.f32 1.0, %v70
    %v73 = vmax.f32 %v71, 0.0
    %v74 = vmax.f32 %v72, 0.0
    %v75 = vld [vmem:[#allocation7] sm:$0xff]
    %v76 = vadd.f32 %v73, %v74
    %v77 = vadd.f32 %v75, %v76
    %78 = vst [vmem:[#allocation7] sm:$0xff] %v77
    // Predicated region
    $region22: #{tpu_custom_call.1} parent=1 // pred_check
      _
    $region23: #{tpu_custom_call.1} parent=1 // pred_check_branch
      %80 = sbr.rel (0) target = $region25
    $region24: #{tpu_custom_call.1} parent=1 // pred_region
      %s82 = ssub.s32 128, 128
      %83 = vsyncadd [#allocation4], %s82
      %s85 = sshll.u32 [#allocation7], 4
      %s86 = int_to_ptr.vmem [resolvable:$true] %s85
      %88 = dma.vmem_to_hbm [thread:$0]  %s86, 128, %s2, [#allocation4]
    $region25: #{tpu_custom_call.1} parent=1 // pred_fallthru
      _
    // Predicated region
    $region26: #{tpu_custom_call.1} parent=1 // pred_check
      _
    $region27: #{tpu_custom_call.1} parent=1 // pred_check_branch
      %90 = sbr.rel (0) target = $region29
    $region28: #{tpu_custom_call.1} parent=1 // pred_region
      %91 = dma.done [#allocation4], 128
    $region29: #{tpu_custom_call.1} parent=1 // pred_fallthru
      _
    %92 = vsyncpa [#allocation3], 1
    %93 = vsyncpa [#allocation6], 1
    %94 = vsyncpa [#allocation4], 1

</llo_original>
